<compile_context>
chip_gen: v7x
topology: tpu7x:2x2x1
jax: 0.10.0
libtpu: 0.0.40
codegen_flags: <defaults>
</compile_context>

<pallas_src>
import functools

import jax
import jax.numpy as jnp
from jax import lax
from jax.experimental import pallas as pl
from jax.experimental.pallas import tpu as pltpu


def _round_up(x, m):
    return (x + m - 1) // m * m


def _fold_bn(gamma, beta, mean, var, eps=1e-5):
    scale = gamma.astype(jnp.float32) * lax.rsqrt(var.astype(jnp.float32) + eps)
    bias = beta.astype(jnp.float32) - mean.astype(jnp.float32) * scale
    return scale, bias


def _dw_pw_kernel(x_ref, wdw_ref, wpw_ref, b1_ref, b2_ref, o_ref, y_buf, *,
                  stride, row_tile, out_w, hq, chunk_rows):
    """One (batch, output-row-strip) tile per grid step.

    x_ref  : (stride*stride*Hq, Wq, Cp) bf16  stride-phase de-interleaved,
             spatially zero-padded (pad=1), channels padded to Cp (mult of 128)
    wdw_ref: (9, Cp)           f32   depthwise 3x3 weights, BN1 scale folded
    wpw_ref: (Cp, Coutp)       bf16  pointwise weights, BN2 scale folded
    b1_ref : (1, Cp)           f32   folded BN1 bias (zero in padded lanes)
    b2_ref : (1, Coutp)        f32   folded BN2 bias
    o_ref  : (row_tile*out_w, Coutp) bf16  lane/sublane-dense output block
    y_buf  : (row_tile*out_w, Cp)    bf16  VMEM staging for the dw output
    """
    cin_p = wdw_ref.shape[-1]
    row0 = pl.program_id(1) * row_tile

    # hoist the small operands: one ref read each per grid step
    wdw = wdw_ref[...]          # (9, Cp) f32
    b1 = b1_ref[...]            # (1, Cp) f32

    def dw_rows(r0_out, nrows):
        """Depthwise 3x3 + BN1 bias + ReLU for `nrows` output rows starting at
        output row `r0_out`; returns (nrows*out_w, Cp) bf16."""
        acc = jnp.zeros((nrows, out_w, cin_p), jnp.float32)
        for kh in range(3):
            qh, ph = divmod(kh, stride)
            slabs = {}                       # one full-width load per phase
            for kw in range(3):
                qw, pw = divmod(kw, stride)
                if pw not in slabs:
                    p = ph * stride + pw     # phase plane index (static)
                    slabs[pw] = x_ref[pl.ds(r0_out + p * hq + qh, nrows),
                                      :, :].astype(jnp.float32)
                patch = slabs[pw][:, qw:qw + out_w, :]      # in-register shift
                acc = acc + patch * wdw[kh * 3 + kw:kh * 3 + kw + 1, :]
        y = jnp.maximum(acc + b1, 0.0)       # BN1 bias + ReLU (scale folded)
        return y.reshape(nrows * out_w, cin_p).astype(jnp.bfloat16)

    n_chunks = row_tile // chunk_rows
    if n_chunks == 1:
        y_all = dw_rows(row0, row_tile)
    else:
        for c in range(n_chunks):            # bounded acc per chunk
            off = c * chunk_rows * out_w
            y_buf[pl.ds(off, chunk_rows * out_w), :] = \
                dw_rows(row0 + c * chunk_rows, chunk_rows)
        y_all = y_buf[...]

    # pointwise 1x1 conv == channel matmul on the MXU (bf16 in, f32 acc),
    # single large-M pass per strip
    y2 = jnp.dot(y_all, wpw_ref[...], preferred_element_type=jnp.float32)
    y2 = jnp.maximum(y2 + b2_ref[...], 0.0)  # BN2 bias + ReLU
    o_ref[...] = y2.astype(o_ref.dtype)      # bf16, lane-dense store


def mobilenet_conv_dw_relu(x_nchw, w_dw_pt, w_pw_pt, bn1, bn2, stride,
                           row_tile=None, chunk_rows=None):
    """Forward pass matching the PyTorch module (inference-mode BN).

    x_nchw : (N, Cin, H, W)       float32
    w_dw_pt: (Cin, 1, 3, 3)       PyTorch depthwise conv weight
    w_pw_pt: (Cout, Cin, 1, 1)    PyTorch pointwise conv weight
    bn1/bn2: (gamma, beta, running_mean, running_var)
    returns: (N, Cout, Ho, Wo)    float32
    """
    n, cin, h, w = x_nchw.shape
    cout = w_pw_pt.shape[0]
    s = int(stride)
    out_h = (h + 2 - 3) // s + 1
    out_w = (w + 2 - 3) // s + 1

    cin_p = _round_up(cin, 128)
    cout_p = _round_up(cout, 128)

    # ---- output-row strip: fill the MXU M dim (>=256 rows where possible,
    # multiple of 8); whole image per grid step for deep layers ----
    if row_tile is None:
        divisors = [d for d in range(1, out_h + 1) if out_h % d == 0]
        target_m, cap_m = 256, 2048
        good = [d for d in divisors if target_m <= d * out_w <= cap_m]
        if good:
            aligned = [d for d in good if (d * out_w) % 8 == 0]
            row_tile = min(aligned) if aligned else min(good)
        else:
            under = [d for d in divisors if d * out_w <= cap_m]
            row_tile = max(under) if under else out_h
    assert out_h % row_tile == 0, (out_h, row_tile)
    num_strips = out_h // row_tile
    m_tile = row_tile * out_w

    # ---- bounded depthwise accumulator: <= ~32 f32 vregs per chunk ----
    if chunk_rows is None:
        max_rows = max(1, 256 // out_w)
        chunk_rows = 1
        for d in range(1, row_tile + 1):
            if row_tile % d == 0 and d <= max_rows:
                chunk_rows = d
    assert row_tile % chunk_rows == 0, (row_tile, chunk_rows)

    # ---- glue: NCHW->NHWC fused with bf16 cast, spatial pad=1, channel pad ----
    x_nhwc = jnp.transpose(x_nchw, (0, 2, 3, 1)).astype(jnp.bfloat16)
    x_nhwc = jnp.pad(x_nhwc, ((0, 0), (1, 1), (1, 1), (0, cin_p - cin)))
    hp, wp = h + 2, w + 2

    if s == 1:
        # unit stride: no phase de-interleave needed (saves two HBM passes)
        hq, wq = hp, wp
        x_ph = x_nhwc
    else:
        # stride-phase de-interleave so the kernel never does strided slices:
        # x_ph[n, (ph*s+pw)*Hq + i, j, c] == x_pad[n, s*i+ph, s*j+pw, c]
        hq = -(-hp // s)
        wq = -(-wp // s)
        x_ph = jnp.pad(x_nhwc,
                       ((0, 0), (0, hq * s - hp), (0, wq * s - wp), (0, 0)))
        x_ph = x_ph.reshape(n, hq, s, wq, s, cin_p)
        x_ph = jnp.transpose(x_ph, (0, 2, 4, 1, 3, 5)).reshape(
            n, s * s * hq, wq, cin_p)

    # ---- BN folding: scale into conv weights, keep only bias for the kernel
    s1, b1 = _fold_bn(*bn1)
    s2, b2 = _fold_bn(*bn2)

    w_dw = jnp.transpose(w_dw_pt[:, 0].astype(jnp.float32), (1, 2, 0)) * s1
    w_dw = jnp.pad(w_dw.reshape(9, cin), ((0, 0), (0, cin_p - cin)))  # (9,Cp) f32

    w_pw = jnp.transpose(w_pw_pt[:, :, 0, 0].astype(jnp.float32), (1, 0)) * s2
    w_pw = jnp.pad(w_pw, ((0, cin_p - cin), (0, cout_p - cout))).astype(jnp.bfloat16)

    b1p = jnp.pad(b1, (0, cin_p - cin)).reshape(1, cin_p)       # zero-padded!
    b2p = jnp.pad(b2, (0, cout_p - cout)).reshape(1, cout_p)

    # ---- per-generation VMEM limit (v7x has 64 MiB/TC vs 128 on v5e/v6e) ----
    in_block = s * s * hq * wq * cin_p * 2            # bf16, resident per batch
    out_block = m_tile * cout_p * 2                   # bf16
    w_bytes = 9 * cin_p * 4 + cin_p * cout_p * 2 + (cin_p + cout_p) * 4
    scratch_bytes = m_tile * cin_p * 2
    est = 2 * in_block + 2 * out_block + 2 * w_bytes + scratch_bytes + (4 << 20)
    try:
        vmem_cap = int(pltpu.get_tpu_info().vmem_capacity_bytes)
    except Exception:                                  # conservative fallback
        vmem_cap = 64 << 20
    vmem_limit = max(est, min(vmem_cap // 2, 64 << 20))
    vmem_limit = int(min(vmem_limit, max(vmem_cap - (8 << 20), 32 << 20)))

    kernel = functools.partial(_dw_pw_kernel, stride=s, row_tile=row_tile,
                               out_w=out_w, hq=hq, chunk_rows=chunk_rows)

    out_flat = pl.pallas_call(
        kernel,
        out_shape=jax.ShapeDtypeStruct((n, out_h * out_w, cout_p), jnp.bfloat16),
        grid=(n, num_strips),
        in_specs=[
            # full per-batch phase image; block index constant along the strip
            # axis so it stays resident (one DMA per batch element)
            pl.BlockSpec((None, s * s * hq, wq, cin_p), lambda b, r: (b, 0, 0, 0)),
            pl.BlockSpec((9, cin_p), lambda b, r: (0, 0)),
            pl.BlockSpec((cin_p, cout_p), lambda b, r: (0, 0)),
            pl.BlockSpec((1, cin_p), lambda b, r: (0, 0)),
            pl.BlockSpec((1, cout_p), lambda b, r: (0, 0)),
        ],
        # flattened-spatial bf16 output block: lane/sublane-dense stores, no
        # in-kernel output reshape, half the writeback bytes
        out_specs=pl.BlockSpec((None, m_tile, cout_p), lambda b, r: (b, r, 0)),
        scratch_shapes=[pltpu.VMEM((m_tile, cin_p), jnp.bfloat16)],
        compiler_params=pltpu.CompilerParams(
            # both axes parallel; on v7x the strip axis can be megacore-sharded
            # when batch == 1
            dimension_semantics=("parallel", "parallel"),
            vmem_limit_bytes=vmem_limit),
    )(x_ph, w_dw, w_pw, b1p, b2p)

    # un-pad channels + NHWC->NCHW on bf16; final cast to f32 matches the
    # PyTorch module's output dtype
    out = out_flat.reshape(n, out_h, out_w, cout_p)[..., :cout]
    return jnp.transpose(out, (0, 3, 1, 2)).astype(jnp.float32)


def _reference(x_nchw, w_dw_pt, w_pw_pt, bn1, bn2, stride):
    """Pure-JAX reference (lax conv, f32) for correctness check."""
    n, cin, h, w = x_nchw.shape
    x = jnp.transpose(x_nchw, (0, 2, 3, 1)).astype(jnp.float32)
    w_dw_hwio = jnp.transpose(w_dw_pt, (2, 3, 1, 0)).astype(jnp.float32)  # (3,3,1,Cin)
    w_pw_hwio = jnp.transpose(w_pw_pt, (2, 3, 1, 0)).astype(jnp.float32)  # (1,1,Cin,Cout)

    s1, b1 = _fold_bn(*bn1)
    s2, b2 = _fold_bn(*bn2)

    y = lax.conv_general_dilated(x, w_dw_hwio, (stride, stride),
                                 ((1, 1), (1, 1)),
                                 dimension_numbers=('NHWC', 'HWIO', 'NHWC'),
                                 feature_group_count=cin)
    y = jnp.maximum(y * s1 + b1, 0.0)
    y = lax.conv_general_dilated(y, w_pw_hwio, (1, 1), 'VALID',
                                 dimension_numbers=('NHWC', 'HWIO', 'NHWC'))
    y = jnp.maximum(y * s2 + b2, 0.0)
    return jnp.transpose(y, (0, 3, 1, 2))


if __name__ == "__main__":
    key = jax.random.PRNGKey(0)
    N, Cin, H, W = 2, 4, 16, 16
    Cout = 8

    k = jax.random.split(key, 8)
    x = jax.random.normal(k[0], (N, Cin, H, W), jnp.float32)
    w_dw = jax.random.normal(k[1], (Cin, 1, 3, 3), jnp.float32) * 0.2
    w_pw = jax.random.normal(k[2], (Cout, Cin, 1, 1), jnp.float32) * 0.2
    # deterministic "BatchNorm" params (inference-mode running stats)
    bn1 = (1.0 + 0.1 * jax.random.normal(k[3], (Cin,), jnp.float32),    # gamma
           0.1 * jax.random.normal(k[4], (Cin,), jnp.float32),          # beta
           0.1 * jax.random.normal(k[5], (Cin,), jnp.float32),          # running_mean
           jnp.abs(jax.random.normal(k[6], (Cin,), jnp.float32)) + 0.5)  # running_var
    bn2 = (1.0 + 0.1 * jax.random.normal(k[7], (Cout,), jnp.float32),
           0.05 * jnp.arange(Cout, dtype=jnp.float32),
           0.02 * jnp.arange(Cout, dtype=jnp.float32),
           jnp.ones((Cout,), jnp.float32))

    # exercise: strided path (2 strips, single chunk), unit-stride path
    # (2 strips x 4 chunks -> VMEM-staged dw output), and default heuristics
    configs = ((2, 4, None), (1, 8, 2), (1, None, None))
    for stride, rt, cr in configs:
        out = mobilenet_conv_dw_relu(x, w_dw, w_pw, bn1, bn2, stride,
                                     row_tile=rt, chunk_rows=cr)
        out = jax.block_until_ready(out)
        ref = _reference(x, w_dw, w_pw, bn1, bn2, stride)
        oh = (H + 2 - 3) // stride + 1
        ow = (W + 2 - 3) // stride + 1
        assert out.shape == (N, Cout, oh, ow), out.shape
        # bf16 activations + bf16 MXU operands (f32 accumulation) => loose tol
        assert jnp.allclose(out, ref, atol=5e-2, rtol=5e-2), (
            f"mismatch vs reference (stride={stride}, row_tile={rt}, "
            f"chunk_rows={cr}), max abs err={jnp.max(jnp.abs(out - ref))}")

    print("KERNEL_OK")
</pallas_src>

<mosaic_0001>
module attributes {stable_mosaic.version = 11 : i64} {
  func.func @_dw_pw_kernel(%arg0: i32, %arg1: i32, %arg2: memref<1x36x9x128xbf16, #tpu.memory_space<vmem>>, %arg3: memref<9x128xf32, #tpu.memory_space<vmem>>, %arg4: memref<128x128xbf16, #tpu.memory_space<vmem>>, %arg5: memref<1x128xf32, #tpu.memory_space<vmem>>, %arg6: memref<1x128xf32, #tpu.memory_space<vmem>>, %arg7: memref<1x32x128xbf16, #tpu.memory_space<vmem>>, %arg8: memref<32x128xbf16, #tpu.memory_space<vmem>>) attributes {dimension_semantics = [#tpu.dimension_semantics<parallel>, #tpu.dimension_semantics<parallel>], iteration_bounds = array<i64: 2, 2>, scalar_prefetch = 0 : i64, scratch_operands = 1 : i64, tpu.core_type = #tpu.core_type<tc>, window_params = [{transform_indices = @transform_0, window_bounds = array<i64: 1, 36, 9, 128>}, {pipeline_mode = #tpu.pipeline_mode<synchronous>, transform_indices = @transform_1, window_bounds = array<i64: 9, 128>}, {pipeline_mode = #tpu.pipeline_mode<synchronous>, transform_indices = @transform_2, window_bounds = array<i64: 128, 128>}, {pipeline_mode = #tpu.pipeline_mode<synchronous>, transform_indices = @transform_3, window_bounds = array<i64: 1, 128>}, {pipeline_mode = #tpu.pipeline_mode<synchronous>, transform_indices = @transform_4, window_bounds = array<i64: 1, 128>}, {transform_indices = @transform_5, window_bounds = array<i64: 1, 32, 128>}]} {
    %c4_i32 = arith.constant 4 : i32
    %0 = arith.muli %arg1, %c4_i32 : i32
    %c0 = arith.constant 0 : index
    %c0_0 = arith.constant 0 : index
    %1 = vector.load %arg3[%c0, %c0_0] : memref<9x128xf32, #tpu.memory_space<vmem>>, vector<9x128xf32>
    %c0_1 = arith.constant 0 : index
    %c0_2 = arith.constant 0 : index
    %2 = vector.load %arg5[%c0_1, %c0_2] : memref<1x128xf32, #tpu.memory_space<vmem>>, vector<1x128xf32>
    %cst = arith.constant 0.000000e+00 : f32
    %3 = vector.broadcast %cst : f32 to vector<4x8x128xf32>
    %c0_i32 = arith.constant 0 : i32
    %4 = arith.addi %0, %c0_i32 : i32
    %c0_i32_3 = arith.constant 0 : i32
    %5 = arith.addi %4, %c0_i32_3 : i32
    %c0_4 = arith.constant 0 : index
    %6 = arith.index_cast %5 : i32 to index
    %c0_5 = arith.constant 0 : index
    %c0_6 = arith.constant 0 : index
    %7 = vector.load %arg2[%c0_4, %6, %c0_5, %c0_6] : memref<1x36x9x128xbf16, #tpu.memory_space<vmem>>, vector<1x4x9x128xbf16>
    %8 = vector.shape_cast %7 : vector<1x4x9x128xbf16> to vector<4x9x128xbf16>
    %9 = arith.extf %8 : vector<4x9x128xbf16> to vector<4x9x128xf32>
    %10 = vector.extract_strided_slice %9 {offsets = [0, 0, 0], sizes = [4, 8, 128], strides = [1, 1, 1]} : vector<4x9x128xf32> to vector<4x8x128xf32>
    %11 = vector.extract_strided_slice %1 {offsets = [0, 0], sizes = [1, 128], strides = [1, 1]} : vector<9x128xf32> to vector<1x128xf32>
    %12 = vector.shape_cast %11 : vector<1x128xf32> to vector<1x1x128xf32>
    %13 = vector.broadcast %12 : vector<1x1x128xf32> to vector<4x8x128xf32>
    %14 = arith.mulf %10, %13 : vector<4x8x128xf32>
    %15 = arith.addf %3, %14 : vector<4x8x128xf32>
    %c9_i32 = arith.constant 9 : i32
    %16 = arith.addi %0, %c9_i32 : i32
    %c0_i32_7 = arith.constant 0 : i32
    %17 = arith.addi %16, %c0_i32_7 : i32
    %c0_8 = arith.constant 0 : index
    %18 = arith.index_cast %17 : i32 to index
    %c0_9 = arith.constant 0 : index
    %c0_10 = arith.constant 0 : index
    %19 = vector.load %arg2[%c0_8, %18, %c0_9, %c0_10] : memref<1x36x9x128xbf16, #tpu.memory_space<vmem>>, vector<1x4x9x128xbf16>
    %20 = vector.shape_cast %19 : vector<1x4x9x128xbf16> to vector<4x9x128xbf16>
    %21 = arith.extf %20 : vector<4x9x128xbf16> to vector<4x9x128xf32>
    %22 = vector.extract_strided_slice %21 {offsets = [0, 0, 0], sizes = [4, 8, 128], strides = [1, 1, 1]} : vector<4x9x128xf32> to vector<4x8x128xf32>
    %23 = vector.extract_strided_slice %1 {offsets = [1, 0], sizes = [1, 128], strides = [1, 1]} : vector<9x128xf32> to vector<1x128xf32>
    %24 = vector.shape_cast %23 : vector<1x128xf32> to vector<1x1x128xf32>
    %25 = vector.broadcast %24 : vector<1x1x128xf32> to vector<4x8x128xf32>
    %26 = arith.mulf %22, %25 : vector<4x8x128xf32>
    %27 = arith.addf %15, %26 : vector<4x8x128xf32>
    %28 = vector.extract_strided_slice %9 {offsets = [0, 1, 0], sizes = [4, 8, 128], strides = [1, 1, 1]} : vector<4x9x128xf32> to vector<4x8x128xf32>
    %29 = vector.extract_strided_slice %1 {offsets = [2, 0], sizes = [1, 128], strides = [1, 1]} : vector<9x128xf32> to vector<1x128xf32>
    %30 = vector.shape_cast %29 : vector<1x128xf32> to vector<1x1x128xf32>
    %31 = vector.broadcast %30 : vector<1x1x128xf32> to vector<4x8x128xf32>
    %32 = arith.mulf %28, %31 : vector<4x8x128xf32>
    %33 = arith.addf %27, %32 : vector<4x8x128xf32>
    %c18_i32 = arith.constant 18 : i32
    %34 = arith.addi %0, %c18_i32 : i32
    %c0_i32_11 = arith.constant 0 : i32
    %35 = arith.addi %34, %c0_i32_11 : i32
    %c0_12 = arith.constant 0 : index
    %36 = arith.index_cast %35 : i32 to index
    %c0_13 = arith.constant 0 : index
    %c0_14 = arith.constant 0 : index
    %37 = vector.load %arg2[%c0_12, %36, %c0_13, %c0_14] : memref<1x36x9x128xbf16, #tpu.memory_space<vmem>>, vector<1x4x9x128xbf16>
    %38 = vector.shape_cast %37 : vector<1x4x9x128xbf16> to vector<4x9x128xbf16>
    %39 = arith.extf %38 : vector<4x9x128xbf16> to vector<4x9x128xf32>
    %40 = vector.extract_strided_slice %39 {offsets = [0, 0, 0], sizes = [4, 8, 128], strides = [1, 1, 1]} : vector<4x9x128xf32> to vector<4x8x128xf32>
    %41 = vector.extract_strided_slice %1 {offsets = [3, 0], sizes = [1, 128], strides = [1, 1]} : vector<9x128xf32> to vector<1x128xf32>
    %42 = vector.shape_cast %41 : vector<1x128xf32> to vector<1x1x128xf32>
    %43 = vector.broadcast %42 : vector<1x1x128xf32> to vector<4x8x128xf32>
    %44 = arith.mulf %40, %43 : vector<4x8x128xf32>
    %45 = arith.addf %33, %44 : vector<4x8x128xf32>
    %c27_i32 = arith.constant 27 : i32
    %46 = arith.addi %0, %c27_i32 : i32
    %c0_i32_15 = arith.constant 0 : i32
    %47 = arith.addi %46, %c0_i32_15 : i32
    %c0_16 = arith.constant 0 : index
    %48 = arith.index_cast %47 : i32 to index
    %c0_17 = arith.constant 0 : index
    %c0_18 = arith.constant 0 : index
    %49 = vector.load %arg2[%c0_16, %48, %c0_17, %c0_18] : memref<1x36x9x128xbf16, #tpu.memory_space<vmem>>, vector<1x4x9x128xbf16>
    %50 = vector.shape_cast %49 : vector<1x4x9x128xbf16> to vector<4x9x128xbf16>
    %51 = arith.extf %50 : vector<4x9x128xbf16> to vector<4x9x128xf32>
    %52 = vector.extract_strided_slice %51 {offsets = [0, 0, 0], sizes = [4, 8, 128], strides = [1, 1, 1]} : vector<4x9x128xf32> to vector<4x8x128xf32>
    %53 = vector.extract_strided_slice %1 {offsets = [4, 0], sizes = [1, 128], strides = [1, 1]} : vector<9x128xf32> to vector<1x128xf32>
    %54 = vector.shape_cast %53 : vector<1x128xf32> to vector<1x1x128xf32>
    %55 = vector.broadcast %54 : vector<1x1x128xf32> to vector<4x8x128xf32>
    %56 = arith.mulf %52, %55 : vector<4x8x128xf32>
    %57 = arith.addf %45, %56 : vector<4x8x128xf32>
    %58 = vector.extract_strided_slice %39 {offsets = [0, 1, 0], sizes = [4, 8, 128], strides = [1, 1, 1]} : vector<4x9x128xf32> to vector<4x8x128xf32>
    %59 = vector.extract_strided_slice %1 {offsets = [5, 0], sizes = [1, 128], strides = [1, 1]} : vector<9x128xf32> to vector<1x128xf32>
    %60 = vector.shape_cast %59 : vector<1x128xf32> to vector<1x1x128xf32>
    %61 = vector.broadcast %60 : vector<1x1x128xf32> to vector<4x8x128xf32>
    %62 = arith.mulf %58, %61 : vector<4x8x128xf32>
    %63 = arith.addf %57, %62 : vector<4x8x128xf32>
    %c0_i32_19 = arith.constant 0 : i32
    %64 = arith.addi %0, %c0_i32_19 : i32
    %c1_i32 = arith.constant 1 : i32
    %65 = arith.addi %64, %c1_i32 : i32
    %c0_20 = arith.constant 0 : index
    %66 = arith.index_cast %65 : i32 to index
    %c0_21 = arith.constant 0 : index
    %c0_22 = arith.constant 0 : index
    %67 = vector.load %arg2[%c0_20, %66, %c0_21, %c0_22] : memref<1x36x9x128xbf16, #tpu.memory_space<vmem>>, vector<1x4x9x128xbf16>
    %68 = vector.shape_cast %67 : vector<1x4x9x128xbf16> to vector<4x9x128xbf16>
    %69 = arith.extf %68 : vector<4x9x128xbf16> to vector<4x9x128xf32>
    %70 = vector.extract_strided_slice %69 {offsets = [0, 0, 0], sizes = [4, 8, 128], strides = [1, 1, 1]} : vector<4x9x128xf32> to vector<4x8x128xf32>
    %71 = vector.extract_strided_slice %1 {offsets = [6, 0], sizes = [1, 128], strides = [1, 1]} : vector<9x128xf32> to vector<1x128xf32>
    %72 = vector.shape_cast %71 : vector<1x128xf32> to vector<1x1x128xf32>
    %73 = vector.broadcast %72 : vector<1x1x128xf32> to vector<4x8x128xf32>
    %74 = arith.mulf %70, %73 : vector<4x8x128xf32>
    %75 = arith.addf %63, %74 : vector<4x8x128xf32>
    %c9_i32_23 = arith.constant 9 : i32
    %76 = arith.addi %0, %c9_i32_23 : i32
    %c1_i32_24 = arith.constant 1 : i32
    %77 = arith.addi %76, %c1_i32_24 : i32
    %c0_25 = arith.constant 0 : index
    %78 = arith.index_cast %77 : i32 to index
    %c0_26 = arith.constant 0 : index
    %c0_27 = arith.constant 0 : index
    %79 = vector.load %arg2[%c0_25, %78, %c0_26, %c0_27] : memref<1x36x9x128xbf16, #tpu.memory_space<vmem>>, vector<1x4x9x128xbf16>
    %80 = vector.shape_cast %79 : vector<1x4x9x128xbf16> to vector<4x9x128xbf16>
    %81 = arith.extf %80 : vector<4x9x128xbf16> to vector<4x9x128xf32>
    %82 = vector.extract_strided_slice %81 {offsets = [0, 0, 0], sizes = [4, 8, 128], strides = [1, 1, 1]} : vector<4x9x128xf32> to vector<4x8x128xf32>
    %83 = vector.extract_strided_slice %1 {offsets = [7, 0], sizes = [1, 128], strides = [1, 1]} : vector<9x128xf32> to vector<1x128xf32>
    %84 = vector.shape_cast %83 : vector<1x128xf32> to vector<1x1x128xf32>
    %85 = vector.broadcast %84 : vector<1x1x128xf32> to vector<4x8x128xf32>
    %86 = arith.mulf %82, %85 : vector<4x8x128xf32>
    %87 = arith.addf %75, %86 : vector<4x8x128xf32>
    %88 = vector.extract_strided_slice %69 {offsets = [0, 1, 0], sizes = [4, 8, 128], strides = [1, 1, 1]} : vector<4x9x128xf32> to vector<4x8x128xf32>
    %89 = vector.extract_strided_slice %1 {offsets = [8, 0], sizes = [1, 128], strides = [1, 1]} : vector<9x128xf32> to vector<1x128xf32>
    %90 = vector.shape_cast %89 : vector<1x128xf32> to vector<1x1x128xf32>
    %91 = vector.broadcast %90 : vector<1x1x128xf32> to vector<4x8x128xf32>
    %92 = arith.mulf %88, %91 : vector<4x8x128xf32>
    %93 = arith.addf %87, %92 : vector<4x8x128xf32>
    %94 = vector.shape_cast %2 : vector<1x128xf32> to vector<1x1x128xf32>
    %95 = vector.broadcast %94 : vector<1x1x128xf32> to vector<4x8x128xf32>
    %96 = arith.addf %93, %95 : vector<4x8x128xf32>
    %cst_28 = arith.constant 0.000000e+00 : f32
    %97 = vector.broadcast %cst_28 : f32 to vector<4x8x128xf32>
    %98 = arith.maximumf %96, %97 : vector<4x8x128xf32>
    %99 = vector.shape_cast %98 : vector<4x8x128xf32> to vector<32x128xf32>
    %100 = arith.truncf %99 : vector<32x128xf32> to vector<32x128xbf16>
    %c0_29 = arith.constant 0 : index
    %c0_30 = arith.constant 0 : index
    %101 = vector.load %arg4[%c0_29, %c0_30] : memref<128x128xbf16, #tpu.memory_space<vmem>>, vector<128x128xbf16>
    %cst_31 = arith.constant dense<0.000000e+00> : vector<32x128xf32>
    %102 = tpu.matmul %100, %101, %cst_31 {dimension_numbers = #tpu.dot_dimension_numbers<[1], [0], [0], [1], [0, 0, 1, 1], [], []>} : vector<32x128xbf16>, vector<128x128xbf16>, vector<32x128xf32> -> vector<32x128xf32>
    %c0_32 = arith.constant 0 : index
    %c0_33 = arith.constant 0 : index
    %103 = vector.load %arg6[%c0_32, %c0_33] : memref<1x128xf32, #tpu.memory_space<vmem>>, vector<1x128xf32>
    %104 = vector.broadcast %103 : vector<1x128xf32> to vector<32x128xf32>
    %105 = arith.addf %102, %104 : vector<32x128xf32>
    %cst_34 = arith.constant 0.000000e+00 : f32
    %106 = vector.broadcast %cst_34 : f32 to vector<32x128xf32>
    %107 = arith.maximumf %105, %106 : vector<32x128xf32>
    %108 = arith.truncf %107 : vector<32x128xf32> to vector<32x128xbf16>
    %c0_35 = arith.constant 0 : index
    %c0_36 = arith.constant 0 : index
    %c0_37 = arith.constant 0 : index
    %109 = vector.load %arg7[%c0_35, %c0_36, %c0_37] : memref<1x32x128xbf16, #tpu.memory_space<vmem>>, vector<1x32x128xbf16>
    %110 = vector.shape_cast %109 : vector<1x32x128xbf16> to vector<32x128xbf16>
    %111 = vector.shape_cast %108 : vector<32x128xbf16> to vector<1x32x128xbf16>
    tpu.vector_store %arg7[%c0_35, %c0_36, %c0_37], %111 {strides = array<i32>} : memref<1x32x128xbf16, #tpu.memory_space<vmem>>, vector<1x32x128xbf16>,
    return
  }
  func.func @transform_0(%arg0: i32, %arg1: i32) -> (i32, i32, i32, i32) {
    %c0_i32 = arith.constant 0 : i32
    %c0_i32_0 = arith.constant 0 : i32
    %c0_i32_1 = arith.constant 0 : i32
    %c0_i32_2 = arith.constant 0 : i32
    return %arg0, %c0_i32, %c0_i32_0, %c0_i32_1 : i32, i32, i32, i32
  }
  func.func @transform_1(%arg0: i32, %arg1: i32) -> (i32, i32) {
    %c0_i32 = arith.constant 0 : i32
    %c0_i32_0 = arith.constant 0 : i32
    %c0_i32_1 = arith.constant 0 : i32
    return %c0_i32, %c0_i32_0 : i32, i32
  }
  func.func @transform_2(%arg0: i32, %arg1: i32) -> (i32, i32) {
    %c0_i32 = arith.constant 0 : i32
    %c0_i32_0 = arith.constant 0 : i32
    %c0_i32_1 = arith.constant 0 : i32
    return %c0_i32, %c0_i32_0 : i32, i32
  }
  func.func @transform_3(%arg0: i32, %arg1: i32) -> (i32, i32) {
    %c0_i32 = arith.constant 0 : i32
    %c0_i32_0 = arith.constant 0 : i32
    %c0_i32_1 = arith.constant 0 : i32
    return %c0_i32, %c0_i32_0 : i32, i32
  }
  func.func @transform_4(%arg0: i32, %arg1: i32) -> (i32, i32) {
    %c0_i32 = arith.constant 0 : i32
    %c0_i32_0 = arith.constant 0 : i32
    %c0_i32_1 = arith.constant 0 : i32
    return %c0_i32, %c0_i32_0 : i32, i32
  }
  func.func @transform_5(%arg0: i32, %arg1: i32) -> (i32, i32, i32) {
    %c0_i32 = arith.constant 0 : i32
    %c0_i32_0 = arith.constant 0 : i32
    return %arg0, %arg1, %c0_i32 : i32, i32, i32
  }
}

</mosaic_0001>

<llo_original>
// kernel: tpu_custom_call.1
$region0: #{tpu_custom_call.1}
  #allocation0 [shape = 'u32[]', space=smem, size = 0x4, offset = 0x4, fixed_abs, tag = 'smem constant byte address 0x4 - core index']
  #allocation1 [shape = 'u32[144,128]{1,0:T(1,128)}', space=vmem, size = 0x12000, scoped, tag = 'internal scratch']
  #allocation2 [shape = 'bf16[32,128]{1,0:T(16,128)(2,1)}', space=vmem, size = 0x2000, scoped, tag = 'scratch operand']
  %s0 = inlined_call_operand.vmem [shape: bf16[2,36,9,128], index: 0, kind: input, shape index: {}]
  %s1 = inlined_call_operand.vmem [shape: f32[9,128], index: 1, kind: input, shape index: {}]
  %s2 = inlined_call_operand.vmem [shape: bf16[128,128], index: 2, kind: input, shape index: {}]
  %s3 = inlined_call_operand.vmem [shape: f32[1,128], index: 3, kind: input, shape index: {}]
  %s4 = inlined_call_operand.vmem [shape: f32[1,128], index: 4, kind: input, shape index: {}]
  %s5 = inlined_call_operand.hbm [shape: bf16[2,64,128], index: 5, kind: output, shape index: {}]
  %s6 = sld [smem:[#allocation0]]
  $region53: #{tpu_custom_call.1} parent=0
    _
  %s8 = ssub.s32 1, %s6
  %s9 = scalar_select 0, %s8, %s6
  $region1: #{tpu_custom_call.1} parent=0
    #allocation3 [shape = 'u8[16384]{0}', space=vmem, size = 0x4000, scoped, tag = 'output window, operand 0']
    #allocation4 [shape = 's32[2]{0}', space=sflag, size = 0x8, scoped, tag = 'scoped memory for tpu_custom_call.1']
    %10 = vsyncpa [#allocation4], 0
    %s11 = scalar_lea.sflag [#allocation4], 1
    %12 = vsyncpa %s11, 0
    loop: start=0, step=1, limit=6
    $region2: #{tpu_custom_call.1} parent=1 // loop_pre_header
      _
    $region3: #{tpu_custom_call.1} parent=1 // loop_header
      %s14 = sphi 0, %s18
      %p15 = scmp.ge.s32.totalorder %s14, 6
      %s21 = sphi 0, %s33
      %s22 = sphi 0, %s29
      %s23 = sphi 0, %s21
      %s24 = sphi 0, %s22
      %s25 = sphi 0, %s23
      %s26 = sphi 0, %s24
      %s36 = sphi 0, %s38
      %s39 = sphi 0, %s36
      %s40 = sphi 0, %s39
      %s56 = sphi 0, %s40
      %s60 = sphi 0, %s60
      %s62 = sphi 0, %s60
      %s63 = sphi 0, %s62
      %s77 = sphi 0, %s63
      %s81 = sphi 0, %s81
      %s83 = sphi 0, %s81
      %s84 = sphi 0, %s83
      %s98 = sphi 0, %s84
      %s102 = sphi 0, %s102
      %s104 = sphi 0, %s102
      %s105 = sphi 0, %s104
      %s119 = sphi 0, %s105
      %s123 = sphi 0, %s123
      %s125 = sphi 0, %s123
      %s126 = sphi 0, %s125
      %s140 = sphi 0, %s126
      %s148 = sphi 0, %s150
      %s151 = sphi 0, %s148
      %s152 = sphi 0, %s151
      %s168 = sphi 0, %s152
    $region4: #{tpu_custom_call.1} parent=1 // loop_header_branch
      %17 = sbr.rel (%p15) target = $region8
    $region5: #{tpu_custom_call.1} parent=1 // loop_body
      %s19 = ssub.s32 %s14, 1
      %s20 = ssub.s32 %s14, 2
      %s27 = sadd.s32 1, %s22
      %p28 = scmp.ge.s32.totalorder %s27, 2
      %s29 = scalar_select %p28, 0, %s27
      %s30 = sadd.s32 1, %s21
      %s31 = scalar_select %p28, %s30, %s21
      %p32 = scmp.ge.s32.totalorder %s31, 2
      %s33 = scalar_select %p32, 0, %s31
      %s34 = ssub.s32 %s21, %s33
      %p35 = scmp.eq.s32.totalorder %s34, 0
      %s37 = sadd.s32 %s36, 1
      %s38 = scalar_select %p35, %s36, %s37
      %p41 = pneg %p35
      %p42 = scmp.eq.s32.totalorder %s14, 3
      %p43 = por %p41, %p42
      %p44 = scmp.ne.s32.totalorder %s36, %s39
      %p45 = scmp.eq.s32.totalorder %s14, 0
      %p46 = por %p44, %p45
      %p47 = scmp.ne.s32.totalorder %s36, %s39
      %p48 = scmp.eq.s32.totalorder %s19, 3
      %p49 = por %p47, %p48
      %p50 = scmp.ne.s32.totalorder %s39, %s40
      %p51 = scmp.eq.s32.totalorder %s19, 0
      %p52 = por %p50, %p51
      %p53 = scmp.ne.s32.totalorder %s39, %s40
      %p54 = scmp.eq.s32.totalorder %s20, 3
      %p55 = por %p53, %p54
      %p57 = scmp.ne.s32.totalorder %s40, %s56
      %p58 = scmp.eq.s32.totalorder %s20, 0
      %p59 = por %p57, %p58
      %s61 = sadd.s32 %s60, 1
      %p64 = scmp.eq.s32.totalorder %s14, 3
      %p65 = scmp.ne.s32.totalorder %s60, %s62
      %p66 = scmp.eq.s32.totalorder %s14, 0
      %p67 = por %p65, %p66
      %p68 = scmp.ne.s32.totalorder %s60, %s62
      %p69 = scmp.eq.s32.totalorder %s19, 3
      %p70 = por %p68, %p69
      %p71 = scmp.ne.s32.totalorder %s62, %s63
      %p72 = scmp.eq.s32.totalorder %s19, 0
      %p73 = por %p71, %p72
      %p74 = scmp.ne.s32.totalorder %s62, %s63
      %p75 = scmp.eq.s32.totalorder %s20, 3
      %p76 = por %p74, %p75
      %p78 = scmp.ne.s32.totalorder %s63, %s77
      %p79 = scmp.eq.s32.totalorder %s20, 0
      %p80 = por %p78, %p79
      %s82 = sadd.s32 %s81, 1
      %p85 = scmp.eq.s32.totalorder %s14, 3
      %p86 = scmp.ne.s32.totalorder %s81, %s83
      %p87 = scmp.eq.s32.totalorder %s14, 0
      %p88 = por %p86, %p87
      %p89 = scmp.ne.s32.totalorder %s81, %s83
      %p90 = scmp.eq.s32.totalorder %s19, 3
      %p91 = por %p89, %p90
      %p92 = scmp.ne.s32.totalorder %s83, %s84
      %p93 = scmp.eq.s32.totalorder %s19, 0
      %p94 = por %p92, %p93
      %p95 = scmp.ne.s32.totalorder %s83, %s84
      %p96 = scmp.eq.s32.totalorder %s20, 3
      %p97 = por %p95, %p96
      %p99 = scmp.ne.s32.totalorder %s84, %s98
      %p100 = scmp.eq.s32.totalorder %s20, 0
      %p101 = por %p99, %p100
      %s103 = sadd.s32 %s102, 1
      %p106 = scmp.eq.s32.totalorder %s14, 3
      %p107 = scmp.ne.s32.totalorder %s102, %s104
      %p108 = scmp.eq.s32.totalorder %s14, 0
      %p109 = por %p107, %p108
      %p110 = scmp.ne.s32.totalorder %s102, %s104
      %p111 = scmp.eq.s32.totalorder %s19, 3
      %p112 = por %p110, %p111
      %p113 = scmp.ne.s32.totalorder %s104, %s105
      %p114 = scmp.eq.s32.totalorder %s19, 0
      %p115 = por %p113, %p114
      %p116 = scmp.ne.s32.totalorder %s104, %s105
      %p117 = scmp.eq.s32.totalorder %s20, 3
      %p118 = por %p116, %p117
      %p120 = scmp.ne.s32.totalorder %s105, %s119
      %p121 = scmp.eq.s32.totalorder %s20, 0
      %p122 = por %p120, %p121
      %s124 = sadd.s32 %s123, 1
      %p127 = scmp.eq.s32.totalorder %s14, 3
      %p128 = scmp.ne.s32.totalorder %s123, %s125
      %p129 = scmp.eq.s32.totalorder %s14, 0
      %p130 = por %p128, %p129
      %p131 = scmp.ne.s32.totalorder %s123, %s125
      %p132 = scmp.eq.s32.totalorder %s19, 3
      %p133 = por %p131, %p132
      %p134 = scmp.ne.s32.totalorder %s125, %s126
      %p135 = scmp.eq.s32.totalorder %s19, 0
      %p136 = por %p134, %p135
      %p137 = scmp.ne.s32.totalorder %s125, %s126
      %p138 = scmp.eq.s32.totalorder %s20, 3
      %p139 = por %p137, %p138
      %p141 = scmp.ne.s32.totalorder %s126, %s140
      %p142 = scmp.eq.s32.totalorder %s20, 0
      %p143 = por %p141, %p142
      %s144 = ssub.s32 %s21, %s33
      %s145 = ssub.s32 %s22, %s29
      %s146 = sor.u32 %s144, %s145
      %p147 = scmp.eq.s32.totalorder %s146, 0
      %s149 = sadd.s32 %s148, 1
      %s150 = scalar_select %p147, %s148, %s149
      %p153 = pneg %p147
      %p154 = scmp.eq.s32.totalorder %s14, 3
      %p155 = por %p153, %p154
      %p156 = scmp.ne.s32.totalorder %s148, %s151
      %p157 = scmp.eq.s32.totalorder %s14, 0
      %p158 = por %p156, %p157
      %p159 = scmp.ne.s32.totalorder %s148, %s151
      %p160 = scmp.eq.s32.totalorder %s19, 3
      %p161 = por %p159, %p160
      %p162 = scmp.ne.s32.totalorder %s151, %s152
      %p163 = scmp.eq.s32.totalorder %s19, 0
      %p164 = por %p162, %p163
      %p165 = scmp.ne.s32.totalorder %s151, %s152
      %p166 = scmp.eq.s32.totalorder %s20, 3
      %p167 = por %p165, %p166
      %p169 = scmp.ne.s32.totalorder %s152, %s168
      %p170 = scmp.eq.s32.totalorder %s20, 0
      %p171 = por %p169, %p170
      %p172 = scmp.le.s32.totalorder 1, %s14
      %p173 = scmp.lt.s32.totalorder %s14, 5
      %p174 = pnand %p172, %p173
      %p175 = pneg %p174
      // Predicated region
      $region9: #{tpu_custom_call.1} parent=5 // pred_check
        _
      $region10: #{tpu_custom_call.1} parent=5 // pred_check_branch
        %177 = sbr.rel (%p174) target = $region12
      $region11: #{tpu_custom_call.1} parent=5 // pred_region
        %s178 = ssub.s32 %s14, 1
        // Predicated region
        $region13: #{tpu_custom_call.1} parent=11 // pred_check
          %p179 = pneg %p73
        $region14: #{tpu_custom_call.1} parent=11 // pred_check_branch
          %181 = sbr.rel (%p179) target = $region16
        $region15: #{tpu_custom_call.1} parent=11 // pred_region
          _
        $region16: #{tpu_custom_call.1} parent=11 // pred_fallthru
          _
        // Predicated region
        $region17: #{tpu_custom_call.1} parent=11 // pred_check
          %p182 = pneg %p94
        $region18: #{tpu_custom_call.1} parent=11 // pred_check_branch
          %184 = sbr.rel (%p182) target = $region20
        $region19: #{tpu_custom_call.1} parent=11 // pred_region
          _
        $region20: #{tpu_custom_call.1} parent=11 // pred_fallthru
          _
        // Predicated region
        $region21: #{tpu_custom_call.1} parent=11 // pred_check
          %p185 = pneg %p115
        $region22: #{tpu_custom_call.1} parent=11 // pred_check_branch
          %187 = sbr.rel (%p185) target = $region24
        $region23: #{tpu_custom_call.1} parent=11 // pred_region
          _
        $region24: #{tpu_custom_call.1} parent=11 // pred_fallthru
          _
        // Predicated region
        $region25: #{tpu_custom_call.1} parent=11 // pred_check
          %p188 = pneg %p136
        $region26: #{tpu_custom_call.1} parent=11 // pred_check_branch
          %190 = sbr.rel (%p188) target = $region28
        $region27: #{tpu_custom_call.1} parent=11 // pred_region
          _
        $region28: #{tpu_custom_call.1} parent=11 // pred_fallthru
          _
      $region12: #{tpu_custom_call.1} parent=5 // pred_fallthru
        _
      %p191 = scmp.lt.s32.totalorder %s14, 4
      // Predicated region
      $region29: #{tpu_custom_call.1} parent=5 // pred_check
        %p192 = pneg %p191
      $region30: #{tpu_custom_call.1} parent=5 // pred_check_branch
        %194 = sbr.rel (%p192) target = $region32
      $region31: #{tpu_custom_call.1} parent=5 // pred_region
        // Predicated region
        $region33: #{tpu_custom_call.1} parent=31 // pred_check
          %p195 = pneg %p46
        $region34: #{tpu_custom_call.1} parent=31 // pred_check_branch
          %197 = sbr.rel (%p195) target = $region36
        $region35: #{tpu_custom_call.1} parent=31 // pred_region
          %p198 = scmp.lt.s32.totalorder %s21, 1
          %s199 = scalar_select %p198, %s21, 1
          %s200 = smul.addr %s199, 72
          %s201 = smul.addr %s200, 4
          %s202 = scalar_lea.vmem %s0, %s201
        $region36: #{tpu_custom_call.1} parent=31 // pred_fallthru
          _
      $region32: #{tpu_custom_call.1} parent=5 // pred_fallthru
        _
      %p203 = scmp.le.s32.totalorder 1, %s14
      %p204 = scmp.lt.s32.totalorder %s14, 5
      %p205 = pnand %p203, %p204
      %p206 = pneg %p205
      // Predicated region
      $region37: #{tpu_custom_call.1} parent=5 // pred_check
        _
      $region38: #{tpu_custom_call.1} parent=5 // pred_check_branch
        %208 = sbr.rel (%p205) target = $region40
      $region39: #{tpu_custom_call.1} parent=5 // pred_region
        %s209 = ssub.s32 %s14, 1
        %p210 = scmp.lt.s32.totalorder %s23, 1
        %s211 = scalar_select %p210, %s23, 1
        %s212 = smul.addr %s211, 72
        %s213 = smul.addr %s212, 4
        %s214 = scalar_lea.vmem %s0, %s213
        %p215 = pneg %p52
        %p216 = pneg %p49
        %p217 = pneg %p73
        %p218 = pneg %p70
        %p219 = pneg %p94
        %p220 = pneg %p91
        %p221 = pneg %p115
        %p222 = pneg %p112
        %p223 = pneg %p136
        %p224 = pneg %p133
        %p225 = pneg %p164
        %p226 = pneg %p161
        %s227 = sand.u32 %s151, 1
        %s228 = scalar_lea.sflag [#allocation4], %s227
        %s229 = sand.u32 %s151, 1
        %s230 = smul.addr %s229, 16
        %s231 = scalar_lea.vmem [#allocation3], %s230
        %p232 = scmp.lt.s32.totalorder %s23, 1
        %s233 = scalar_select %p232, %s23, 1
        %s234 = smul.addr %s233, 72
        %s235 = smul.addr %s234, 4
        %s236 = scalar_lea.vmem %s0, %s235
        %s237 = smul.u32 4, %s24
        %s239 = smul.u32 %s24, 4
        %v240 = vld [vmem:[%s1] sm:$0xff]
        %v241 = vld [vmem:[%s1 + $0x8] sm:$0x1]
        %v242 = vld [vmem:[%s3] sm:$0x1]
        %s243 = smul.u32 %s239, 2
        %s244 = smul.addr %s243, 4
        %s245 = scalar_lea.vmem %s236, %s244
        %v246 = vld [vmem:[%s245] sm:$0xf]
        %v247 = vld [vmem:[%s245 + $0x4] sm:$0x1]
        %v248 = vld [vmem:[%s245 + $0x8] sm:$0xf]
        %v249 = vld [vmem:[%s245 + $0xc] sm:$0x1]
        %v250 = vld [vmem:[%s245 + $0x10] sm:$0xf]
        %v251 = vld [vmem:[%s245 + $0x14] sm:$0x1]
        %v252 = vld [vmem:[%s245 + $0x18] sm:$0xf]
        %v253 = vld [vmem:[%s245 + $0x1c] sm:$0x1]
        %v254 = vunpack.c.l.bf16 %v246
        %v255 = vunpack.c.l.bf16 %v247
        %v256 = vunpack.c.l.bf16 %v248
        %v257 = vunpack.c.l.bf16 %v249
        %v258 = vunpack.c.l.bf16 %v250
        %v259 = vunpack.c.l.bf16 %v251
        %v260 = vunpack.c.l.bf16 %v252
        %v261 = vunpack.c.l.bf16 %v253
        %v262 = vlaneseq
        %v263 = vshrl.u32 %v262, 7
        %v264 = vsub.s32 0, %v263
        %v265 = vrot.slane %v240, %v264
        %v266 = vmul.f32 %v254, %v265
        %v267 = vmul.f32 %v256, %v265
        %v268 = vmul.f32 %v258, %v265
        %v269 = vmul.f32 %v260, %v265
        %v270 = vadd.f32 %v266, 0.0
        %v271 = vadd.f32 %v267, 0.0
        %v272 = vadd.f32 %v268, 0.0
        %v273 = vadd.f32 %v269, 0.0
        %s274 = sadd.s32 %s239, 9
        %s275 = smul.u32 %s274, 2
        %s276 = smul.addr %s275, 4
        %s277 = scalar_lea.vmem %s236, %s276
        %v278 = vld [vmem:[%s277] sm:$0xf]
        %v279 = vld [vmem:[%s277 + $0x8] sm:$0xf]
        %v280 = vld [vmem:[%s277 + $0x10] sm:$0xf]
        %v281 = vld [vmem:[%s277 + $0x18] sm:$0xf]
        %v282 = vunpack.c.l.bf16 %v278
        %v283 = vunpack.c.l.bf16 %v279
        %v284 = vunpack.c.l.bf16 %v280
        %v285 = vunpack.c.l.bf16 %v281
        %v286 = vlaneseq
        %v287 = vshrl.u32 %v286, 7
        %v288 = vsub.s32 1, %v287
        %v289 = vrot.slane %v240, %v288
        %v290 = vmul.f32 %v282, %v289
        %v291 = vmul.f32 %v283, %v289
        %v292 = vmul.f32 %v284, %v289
        %v293 = vmul.f32 %v285, %v289
        %v294 = vadd.f32 %v270, %v290
        %v295 = vadd.f32 %v271, %v291
        %v296 = vadd.f32 %v272, %v292
        %v297 = vadd.f32 %v273, %v293
        %v298 = vlaneseq
        %v299 = vshrl.u32 %v298, 7
        %v300 = vsub.s32 2, %v299
        %v301 = vrot.slane %v240, %v300
        %v302 = vmul.f32 %v254, %v301
        %v303 = vmul.f32 %v255, %v301
        %v304 = vmul.f32 %v256, %v301
        %v305 = vmul.f32 %v257, %v301
        %v306 = vmul.f32 %v258, %v301
        %v307 = vmul.f32 %v259, %v301
        %v308 = vmul.f32 %v260, %v301
        %v309 = vmul.f32 %v261, %v301
        %vm318 = vcmask 1046528
        %v319 = vrot.slane %v302, 1
        %v320 = vrot.slane %v303, 1
        %v321 = vsel %vm318, %v319, %v320
        %v322 = vrot.slane %v304, 1
        %v323 = vrot.slane %v305, 1
        %v324 = vsel %vm318, %v322, %v323
        %v325 = vrot.slane %v306, 1
        %v326 = vrot.slane %v307, 1
        %v327 = vsel %vm318, %v325, %v326
        %v328 = vrot.slane %v308, 1
        %v329 = vrot.slane %v309, 1
        %v330 = vsel %vm318, %v328, %v329
        %v335 = vadd.f32 %v294, %v321
        %v336 = vadd.f32 %v295, %v324
        %v337 = vadd.f32 %v296, %v327
        %v338 = vadd.f32 %v297, %v330
        %s339 = sadd.s32 %s239, 18
        %s340 = smul.u32 %s339, 2
        %s341 = smul.addr %s340, 4
        %s342 = scalar_lea.vmem %s236, %s341
        %v343 = vld [vmem:[%s342] sm:$0xf]
        %v344 = vld [vmem:[%s342 + $0x4] sm:$0x1]
        %v345 = vld [vmem:[%s342 + $0x8] sm:$0xf]
        %v346 = vld [vmem:[%s342 + $0xc] sm:$0x1]
        %v347 = vld [vmem:[%s342 + $0x10] sm:$0xf]
        %v348 = vld [vmem:[%s342 + $0x14] sm:$0x1]
        %v349 = vld [vmem:[%s342 + $0x18] sm:$0xf]
        %v350 = vld [vmem:[%s342 + $0x1c] sm:$0x1]
        %v351 = vunpack.c.l.bf16 %v343
        %v352 = vunpack.c.l.bf16 %v344
        %v353 = vunpack.c.l.bf16 %v345
        %v354 = vunpack.c.l.bf16 %v346
        %v355 = vunpack.c.l.bf16 %v347
        %v356 = vunpack.c.l.bf16 %v348
        %v357 = vunpack.c.l.bf16 %v349
        %v358 = vunpack.c.l.bf16 %v350
        %v359 = vlaneseq
        %v360 = vshrl.u32 %v359, 7
        %v361 = vsub.s32 3, %v360
        %v362 = vrot.slane %v240, %v361
        %v363 = vmul.f32 %v351, %v362
        %v364 = vmul.f32 %v353, %v362
        %v365 = vmul.f32 %v355, %v362
        %v366 = vmul.f32 %v357, %v362
        %v367 = vadd.f32 %v335, %v363
        %v368 = vadd.f32 %v336, %v364
        %v369 = vadd.f32 %v337, %v365
        %v370 = vadd.f32 %v338, %v366
        %s371 = sadd.s32 %s239, 27
        %s372 = smul.u32 %s371, 2
        %s373 = smul.addr %s372, 4
        %s374 = scalar_lea.vmem %s236, %s373
        %v375 = vld [vmem:[%s374] sm:$0xf]
        %v376 = vld [vmem:[%s374 + $0x8] sm:$0xf]
        %v377 = vld [vmem:[%s374 + $0x10] sm:$0xf]
        %v378 = vld [vmem:[%s374 + $0x18] sm:$0xf]
        %v379 = vunpack.c.l.bf16 %v375
        %v380 = vunpack.c.l.bf16 %v376
        %v381 = vunpack.c.l.bf16 %v377
        %v382 = vunpack.c.l.bf16 %v378
        %v383 = vlaneseq
        %v384 = vshrl.u32 %v383, 7
        %v385 = vsub.s32 4, %v384
        %v386 = vrot.slane %v240, %v385
        %v387 = vmul.f32 %v379, %v386
        %v388 = vmul.f32 %v380, %v386
        %v389 = vmul.f32 %v381, %v386
        %v390 = vmul.f32 %v382, %v386
        %v391 = vadd.f32 %v367, %v387
        %v392 = vadd.f32 %v368, %v388
        %v393 = vadd.f32 %v369, %v389
        %v394 = vadd.f32 %v370, %v390
        %v395 = vlaneseq
        %v396 = vshrl.u32 %v395, 7
        %v397 = vsub.s32 5, %v396
        %v398 = vrot.slane %v240, %v397
        %v399 = vmul.f32 %v351, %v398
        %v400 = vmul.f32 %v352, %v398
        %v401 = vmul.f32 %v353, %v398
        %v402 = vmul.f32 %v354, %v398
        %v403 = vmul.f32 %v355, %v398
        %v404 = vmul.f32 %v356, %v398
        %v405 = vmul.f32 %v357, %v398
        %v406 = vmul.f32 %v358, %v398
        %v415 = vrot.slane %v399, 1
        %v416 = vrot.slane %v400, 1
        %v417 = vsel %vm318, %v415, %v416
        %v418 = vrot.slane %v401, 1
        %v419 = vrot.slane %v402, 1
        %v420 = vsel %vm318, %v418, %v419
        %v421 = vrot.slane %v403, 1
        %v422 = vrot.slane %v404, 1
        %v423 = vsel %vm318, %v421, %v422
        %v424 = vrot.slane %v405, 1
        %v425 = vrot.slane %v406, 1
        %v426 = vsel %vm318, %v424, %v425
        %v431 = vadd.f32 %v391, %v417
        %v432 = vadd.f32 %v392, %v420
        %v433 = vadd.f32 %v393, %v423
        %v434 = vadd.f32 %v394, %v426
        %s435 = sadd.s32 %s239, 1
        %s436 = smul.u32 %s435, 2
        %s437 = smul.addr %s436, 4
        %s438 = scalar_lea.vmem %s236, %s437
        %v439 = vld [vmem:[%s438] sm:$0xf]
        %v440 = vld [vmem:[%s438 + $0x4] sm:$0x1]
        %v441 = vld [vmem:[%s438 + $0x8] sm:$0xf]
        %v442 = vld [vmem:[%s438 + $0xc] sm:$0x1]
        %v443 = vld [vmem:[%s438 + $0x10] sm:$0xf]
        %v444 = vld [vmem:[%s438 + $0x14] sm:$0x1]
        %v445 = vld [vmem:[%s438 + $0x18] sm:$0xf]
        %v446 = vld [vmem:[%s438 + $0x1c] sm:$0x1]
        %v447 = vunpack.c.l.bf16 %v439
        %v448 = vunpack.c.l.bf16 %v440
        %v449 = vunpack.c.l.bf16 %v441
        %v450 = vunpack.c.l.bf16 %v442
        %v451 = vunpack.c.l.bf16 %v443
        %v452 = vunpack.c.l.bf16 %v444
        %v453 = vunpack.c.l.bf16 %v445
        %v454 = vunpack.c.l.bf16 %v446
        %v455 = vlaneseq
        %v456 = vshrl.u32 %v455, 7
        %v457 = vsub.s32 6, %v456
        %v458 = vrot.slane %v240, %v457
        %v459 = vmul.f32 %v447, %v458
        %v460 = vmul.f32 %v449, %v458
        %v461 = vmul.f32 %v451, %v458
        %v462 = vmul.f32 %v453, %v458
        %v463 = vadd.f32 %v431, %v459
        %v464 = vadd.f32 %v432, %v460
        %v465 = vadd.f32 %v433, %v461
        %v466 = vadd.f32 %v434, %v462
        %s467 = sadd.s32 %s239, 10
        %s468 = smul.u32 %s467, 2
        %s469 = smul.addr %s468, 4
        %s470 = scalar_lea.vmem %s236, %s469
        %v471 = vld [vmem:[%s470] sm:$0xf]
        %v472 = vld [vmem:[%s470 + $0x8] sm:$0xf]
        %v473 = vld [vmem:[%s470 + $0x10] sm:$0xf]
        %v474 = vld [vmem:[%s470 + $0x18] sm:$0xf]
        %v475 = vunpack.c.l.bf16 %v471
        %v476 = vunpack.c.l.bf16 %v472
        %v477 = vunpack.c.l.bf16 %v473
        %v478 = vunpack.c.l.bf16 %v474
        %v479 = vlaneseq
        %v480 = vshrl.u32 %v479, 7
        %v481 = vsub.s32 7, %v480
        %v482 = vrot.slane %v240, %v481
        %v483 = vmul.f32 %v475, %v482
        %v484 = vmul.f32 %v476, %v482
        %v485 = vmul.f32 %v477, %v482
        %v486 = vmul.f32 %v478, %v482
        %v487 = vadd.f32 %v463, %v483
        %v488 = vadd.f32 %v464, %v484
        %v489 = vadd.f32 %v465, %v485
        %v490 = vadd.f32 %v466, %v486
        %v491 = vlaneseq
        %v492 = vshrl.u32 %v491, 7
        %v493 = vsub.s32 0, %v492
        %v494 = vrot.slane %v241, %v493
        %v495 = vmul.f32 %v447, %v494
        %v496 = vmul.f32 %v448, %v494
        %v497 = vmul.f32 %v449, %v494
        %v498 = vmul.f32 %v450, %v494
        %v499 = vmul.f32 %v451, %v494
        %v500 = vmul.f32 %v452, %v494
        %v501 = vmul.f32 %v453, %v494
        %v502 = vmul.f32 %v454, %v494
        %v511 = vrot.slane %v495, 1
        %v512 = vrot.slane %v496, 1
        %v513 = vsel %vm318, %v511, %v512
        %v514 = vrot.slane %v497, 1
        %v515 = vrot.slane %v498, 1
        %v516 = vsel %vm318, %v514, %v515
        %v517 = vrot.slane %v499, 1
        %v518 = vrot.slane %v500, 1
        %v519 = vsel %vm318, %v517, %v518
        %v520 = vrot.slane %v501, 1
        %v521 = vrot.slane %v502, 1
        %v522 = vsel %vm318, %v520, %v521
        %v527 = vadd.f32 %v487, %v513
        %v528 = vadd.f32 %v488, %v516
        %v529 = vadd.f32 %v489, %v519
        %v530 = vadd.f32 %v490, %v522
        %v532 = vlaneseq
        %v533 = vshrl.u32 %v532, 7
        %v534 = vsub.s32 0, %v533
        %v535 = vrot.slane %v242, %v534
        %v537 = vadd.f32 %v527, %v535
        %v538 = vadd.f32 %v528, %v535
        %v539 = vadd.f32 %v529, %v535
        %v540 = vadd.f32 %v530, %v535
        %v541 = vmax.f32 %v537, 0.0
        %v542 = vmax.f32 %v538, 0.0
        %v543 = vmax.f32 %v539, 0.0
        %v544 = vmax.f32 %v540, 0.0
        %v545 = vpack.c.bf16 %v542, %v541
        %v546 = vpack.c.bf16 %v544, %v543
        %v547 = vld [vmem:[%s2] sm:$0xf]
        %v548 = vld [vmem:[%s2 + $0x4] sm:$0xf]
        %v549 = vld [vmem:[%s2 + $0x8] sm:$0xf]
        %v550 = vld [vmem:[%s2 + $0xc] sm:$0xf]
        %v551 = vld [vmem:[%s2 + $0x10] sm:$0xf]
        %v552 = vld [vmem:[%s2 + $0x14] sm:$0xf]
        %v553 = vld [vmem:[%s2 + $0x18] sm:$0xf]
        %v554 = vld [vmem:[%s2 + $0x1c] sm:$0xf]
        %v555 = vld [vmem:[%s2 + $0x20] sm:$0xf]
        %v556 = vld [vmem:[%s2 + $0x24] sm:$0xf]
        %v557 = vld [vmem:[%s2 + $0x28] sm:$0xf]
        %v558 = vld [vmem:[%s2 + $0x2c] sm:$0xf]
        %v559 = vld [vmem:[%s2 + $0x30] sm:$0xf]
        %v560 = vld [vmem:[%s2 + $0x34] sm:$0xf]
        %v561 = vld [vmem:[%s2 + $0x38] sm:$0xf]
        %v562 = vld [vmem:[%s2 + $0x3c] sm:$0xf]
        %v563 = vld [vmem:[%s4] sm:$0x1]
        %v565 = vlaneseq
        %v566 = vshrl.u32 %v565, 7
        %v567 = vsub.s32 0, %v566
        %v568 = vrot.slane %v563, %v567
        %v586 = vunpack.c.l.b16 %v547
        %v587 = vunpack.c.l.b16 %v548
        %v588 = vunpack.c.l.b16 %v549
        %v589 = vunpack.c.l.b16 %v550
        %v590 = vunpack.c.l.b16 %v551
        %v591 = vunpack.c.l.b16 %v552
        %v592 = vunpack.c.l.b16 %v553
        %v593 = vunpack.c.l.b16 %v554
        %v594 = vunpack.c.l.b16 %v555
        %v595 = vunpack.c.l.b16 %v556
        %v596 = vunpack.c.l.b16 %v557
        %v597 = vunpack.c.l.b16 %v558
        %v598 = vunpack.c.l.b16 %v559
        %v599 = vunpack.c.l.b16 %v560
        %v600 = vunpack.c.l.b16 %v561
        %v601 = vunpack.c.l.b16 %v562
        %v602 = vpack.c.b16 %v587, %v586
        %v603 = vpack.c.b16 %v589, %v588
        %v604 = vpack.c.b16 %v591, %v590
        %v605 = vpack.c.b16 %v593, %v592
        %v606 = vpack.c.b16 %v595, %v594
        %v607 = vpack.c.b16 %v597, %v596
        %v608 = vpack.c.b16 %v599, %v598
        %v609 = vpack.c.b16 %v601, %v600
        %618 = vmatprep.subr.bf16.mxu0 0
        %619 = vmatpush1.bf16.msra.mxu0 %v602
        %620 = vmatprep.subr.bf16.mxu0 0
        %621 = vmatpush1.bf16.msra.mxu0 %v603
        %622 = vmatprep.subr.bf16.mxu0 0
        %623 = vmatpush1.bf16.msra.mxu0 %v604
        %624 = vmatprep.subr.bf16.mxu0 0
        %625 = vmatpush1.bf16.msra.mxu0 %v605
        %626 = vmatprep.subr.bf16.mxu0 0
        %627 = vmatpush1.bf16.msra.mxu0 %v606
        %628 = vmatprep.subr.bf16.mxu0 0
        %629 = vmatpush1.bf16.msra.mxu0 %v607
        %630 = vmatprep.subr.bf16.mxu0 0
        %631 = vmatpush1.bf16.msra.mxu0 %v608
        %632 = vmatprep.subr.bf16.mxu0 0
        %633 = vmatpush1.bf16.msra.mxu0 %v609
        %634 = vmatprep.subr.bf16.mxu0 0
        %635 = vmatpush1.bf16.msra.mxu0 0
        %636 = vmatprep.subr.bf16.mxu0 0
        %637 = vmatpush1.bf16.msra.mxu0 0
        %638 = vmatprep.subr.bf16.mxu0 0
        %639 = vmatpush1.bf16.msra.mxu0 0
        %640 = vmatprep.subr.bf16.mxu0 0
        %641 = vmatpush1.bf16.msra.mxu0 0
        %642 = vmatprep.subr.bf16.mxu0 0
        %643 = vmatpush1.bf16.msra.mxu0 0
        %644 = vmatprep.subr.bf16.mxu0 0
        %645 = vmatpush1.bf16.msra.mxu0 0
        %646 = vmatprep.subr.bf16.mxu0 0
        %647 = vmatpush1.bf16.msra.mxu0 0
        %648 = vmatprep.subr.bf16.mxu0 0
        %649 = vmatpush1.bf16.msra.mxu0 0
        %650 = vmatprep.mubr.bf16.mxu0 0
        %651 = vmatmul.mubr.bf16.gmra.mrb[0].mxu0 %v545
        %v652 = vpop.f32.mrb[0].mxu0
        %v653 = vadd.f32 %v568, %v652
        %v654 = vpop.f32.mrb[0].mxu0
        %v655 = vpop.f32.mrb[0].mxu0
        %v656 = vadd.f32 %v568, %v655
        %v657 = vpop.f32.mrb[0].mxu0
        %658 = vmatprep.mubr.bf16.mxu0 0
        %659 = vmatmul.mubr.bf16.gmra.mrb[0].mxu0 %v546
        %v660 = vpop.f32.mrb[0].mxu0
        %v661 = vadd.f32 %v568, %v660
        %v662 = vpop.f32.mrb[0].mxu0
        %v663 = vpop.f32.mrb[0].mxu0
        %v664 = vadd.f32 %v568, %v663
        %v665 = vpop.f32.mrb[0].mxu0
        %666 = vdwg.mxu0
        %v667 = vmax.f32 %v653, 0.0
        %v668 = vmax.f32 %v656, 0.0
        %v669 = vmax.f32 %v661, 0.0
        %v670 = vmax.f32 %v664, 0.0
        %v671 = vpack.c.bf16 %v668, %v667
        %v672 = vpack.c.bf16 %v670, %v669
        %v675 = vunpack.c.l.b16 %v671
        %v676 = vunpack.c.h.b16 %v671
        %v677 = vunpack.c.l.b16 %v672
        %v678 = vunpack.c.h.b16 %v672
        %v679 = vpack.c.b16 %v675, %v675
        %v680 = vpack.c.b16 %v676, %v676
        %v681 = vpack.c.b16 %v677, %v677
        %v682 = vpack.c.b16 %v678, %v678
        %687 = vst [vmem:[%s231] sm:$0xf] %v679
        %688 = vst [vmem:[%s231 + $0x4] sm:$0xf] %v680
        %689 = vst [vmem:[%s231 + $0x8] sm:$0xf] %v681
        %690 = vst [vmem:[%s231 + $0xc] sm:$0xf] %v682
        %s691 = sand.u32 %s151, 1
        %s692 = scalar_lea.sflag [#allocation4], %s691
        %s693 = sand.u32 %s151, 1
        %s694 = smul.addr %s693, 16
        %s695 = scalar_lea.vmem [#allocation3], %s694
        // Predicated region
        $region41: #{tpu_custom_call.1} parent=39 // pred_check
          %p696 = pneg %p161
        $region42: #{tpu_custom_call.1} parent=39 // pred_check_branch
          %698 = sbr.rel (%p696) target = $region44
        $region43: #{tpu_custom_call.1} parent=39 // pred_region
          %s699 = smul.u32 4, %s24
          %s701 = ssub.s32 256, 256
          %702 = vsyncadd %s692, %s701
          %s703 = smul.addr %s23, 8
          %s704 = sadd.s32 %s699, %s703
          %s705 = smul.addr %s704, 64
          %s706 = scalar_lea.hbm %s5, %s705
          %s707 = sshll.u32 %s695, 4
          %s708 = int_to_ptr.vmem [resolvable:$true] %s707
          %713 = dma.vmem_to_hbm [thread:$0]  %s708, 256, %s706, %s692, 64, 64, 4
        $region44: #{tpu_custom_call.1} parent=39 // pred_fallthru
          _
      $region40: #{tpu_custom_call.1} parent=5 // pred_fallthru
        _
      %p714 = scmp.le.s32.totalorder 2, %s14
      // Predicated region
      $region45: #{tpu_custom_call.1} parent=5 // pred_check
        %p715 = pneg %p714
      $region46: #{tpu_custom_call.1} parent=5 // pred_check_branch
        %717 = sbr.rel (%p715) target = $region48
      $region47: #{tpu_custom_call.1} parent=5 // pred_region
        %s718 = ssub.s32 %s14, 2
        // Predicated region
        $region49: #{tpu_custom_call.1} parent=47 // pred_check
          %p719 = pneg %p167
        $region50: #{tpu_custom_call.1} parent=47 // pred_check_branch
          %721 = sbr.rel (%p719) target = $region52
        $region51: #{tpu_custom_call.1} parent=47 // pred_region
          %s722 = sand.u32 %s152, 1
          %s723 = scalar_lea.sflag [#allocation4], %s722
          %s724 = sand.u32 %s152, 1
          %s725 = smul.addr %s724, 16
          %s726 = scalar_lea.vmem [#allocation3], %s725
          %727 = dma.done %s723, 256
        $region52: #{tpu_custom_call.1} parent=47 // pred_fallthru
          _
      $region48: #{tpu_custom_call.1} parent=5 // pred_fallthru
        _
    $region6: #{tpu_custom_call.1} parent=1 // loop_footer
      %s18 = sadd.s32 1, %s14
    $region7: #{tpu_custom_call.1} parent=1 // loop_footer_branch
      %13 = sbr.rel target = $region3
    $region8: #{tpu_custom_call.1} parent=1 // loop_exit
      _
    %728 = vsyncpa [#allocation4], 1
    %s729 = scalar_lea.sflag [#allocation4], 1
    %730 = vsyncpa %s729, 1

</llo_original>
